<compile_context>
chip_gen: v6e
topology: v6e:2x2x1
jax: 0.10.0
libtpu: 0.0.40
codegen_flags: <defaults>
</compile_context>

<pallas_src>
import jax
import jax.numpy as jnp
from jax.experimental import pallas as pl
from jax.experimental.pallas import tpu as pltpu

# Static conv config (from the module)
C_IN, C_OUT, KH, KW = 3, 6, 3, 3

K = C_IN * KH * KW            # 27 (contraction dim), ordered (Cin, kh, kw)
K_PAD = 32                    # contraction dim padded to a sublane multiple
BIAS_ROW = K                  # spare padding row used to fold the bias in
C_OUT_PAD = 8                 # output channels padded to one sublane group
MAX_TILE_P = 2048             # lane-tile cap (keeps per-step VMEM small)


def conv2d_kernel(w_ref, x_ref, o_ref):
    # w_ref: (C_OUT_PAD, K_PAD)     weights (+ bias column), grid-invariant
    # x_ref: (1, K_PAD, TILE_P)     im2col patches (+ ones row), pixels on lanes
    # o_ref: (1, C_OUT_PAD, TILE_P) lane-dense output slab
    o_ref[0] = jnp.dot(
        w_ref[...], x_ref[0], preferred_element_type=jnp.float32
    ).astype(o_ref.dtype)


@jax.jit
def conv_test_forward(x_nchw, w_oihw, bias):
    """Forward pass of ConvTest. x_nchw: (N, 3, H, W) float32 -> (N, 6, Ho, Wo)."""
    N, Cin, H, W = x_nchw.shape
    assert Cin == C_IN
    Ho, Wo = H - KH + 1, W - KW + 1
    PW = Ho * Wo
    TILE_P = min(MAX_TILE_P, ((PW + 127) // 128) * 128)
    GP = pl.cdiv(PW, TILE_P)
    PW_PAD = GP * TILE_P
    dt = x_nchw.dtype

    # ---- im2col in one XLA op; feature ordering is (Cin, kh, kw) ------------
    patches = jax.lax.conv_general_dilated_patches(
        x_nchw, (KH, KW), (1, 1), "VALID",
        dimension_numbers=("NCHW", "OIHW", "NCHW"),
    ).reshape(N, K, PW)

    # ---- pad contraction + lane axes; ones row folds the bias into the dot --
    # (K axis is explicitly zero-padded so the contraction stays exact.)
    x3d = jnp.zeros((N, K_PAD, PW_PAD), dt)
    x3d = x3d.at[:, :K, :PW].set(patches)
    x3d = x3d.at[:, BIAS_ROW, :PW].set(1.0)

    w2d = jnp.zeros((C_OUT_PAD, K_PAD), dt)
    w2d = w2d.at[:C_OUT, :K].set(w_oihw.reshape(C_OUT, K))
    w2d = w2d.at[:C_OUT, BIAS_ROW].set(bias)

    # ---- Pallas call: grid over (image, pixel tiles), both parallel ---------
    out3d = pl.pallas_call(
        conv2d_kernel,
        out_shape=jax.ShapeDtypeStruct((N, C_OUT_PAD, PW_PAD), dt),
        grid_spec=pltpu.PrefetchScalarGridSpec(
            num_scalar_prefetch=0,
            grid=(N, GP),
            in_specs=[
                pl.BlockSpec((C_OUT_PAD, K_PAD), lambda n, p: (0, 0)),
                pl.BlockSpec((1, K_PAD, TILE_P), lambda n, p: (n, 0, p)),
            ],
            out_specs=pl.BlockSpec((1, C_OUT_PAD, TILE_P), lambda n, p: (n, 0, p)),
        ),
        compiler_params=pltpu.CompilerParams(
            dimension_semantics=("parallel", "parallel"),
        ),
    )(w2d, x3d)

    # ---- (N, C_OUT_PAD, PW_PAD) slab -> NCHW: slice + reshape only ----------
    return out3d[:, :C_OUT, :PW].reshape(N, C_OUT, Ho, Wo)


if __name__ == "__main__":
    key = jax.random.PRNGKey(0)
    k_x, k_w, k_b = jax.random.split(key, 3)

    # Small shapes consistent with the module: batch=2, C_in=3, spatial=16.
    N, H, W = 2, 16, 16
    x = jax.random.normal(k_x, (N, C_IN, H, W), dtype=jnp.float32)

    # Deterministic parameter init (PyTorch-style uniform bound = 1/sqrt(fan_in)).
    fan_in = C_IN * KH * KW
    bound = 1.0 / jnp.sqrt(jnp.float32(fan_in))
    w = jax.random.uniform(k_w, (C_OUT, C_IN, KH, KW), jnp.float32, -bound, bound)
    b = jax.random.uniform(k_b, (C_OUT,), jnp.float32, -bound, bound)

    out = conv_test_forward(x, w, b)
    out = jax.block_until_ready(out)

    # Cross-check against XLA's conv for correctness.
    ref = jax.lax.conv_general_dilated(
        x, w, window_strides=(1, 1), padding="VALID",
        dimension_numbers=("NCHW", "OIHW", "NCHW"),
    ) + b[None, :, None, None]
    assert out.shape == (N, C_OUT, H - 2, W - 2)
    assert jnp.allclose(out, ref, atol=1e-5, rtol=1e-5)

    print("KERNEL_OK")
</pallas_src>

<mosaic_0001>
module attributes {stable_mosaic.version = 11 : i64} {
  func.func @conv2d_kernel(%arg0: i32, %arg1: i32, %arg2: memref<8x32xf32, #tpu.memory_space<vmem>>, %arg3: memref<1x32x256xf32, #tpu.memory_space<vmem>>, %arg4: memref<1x8x256xf32, #tpu.memory_space<vmem>>) attributes {dimension_semantics = [#tpu.dimension_semantics<parallel>, #tpu.dimension_semantics<parallel>], iteration_bounds = array<i64: 2, 1>, scalar_prefetch = 0 : i64, scratch_operands = 0 : i64, tpu.core_type = #tpu.core_type<tc>, window_params = [{pipeline_mode = #tpu.pipeline_mode<synchronous>, transform_indices = @transform_0, window_bounds = array<i64: 8, 32>}, {transform_indices = @transform_1, window_bounds = array<i64: 1, 32, 256>}, {transform_indices = @transform_2, window_bounds = array<i64: 1, 8, 256>}]} {
    %c0 = arith.constant 0 : index
    %c0_0 = arith.constant 0 : index
    %0 = vector.load %arg2[%c0, %c0_0] : memref<8x32xf32, #tpu.memory_space<vmem>>, vector<8x32xf32>
    %c0_1 = arith.constant 0 : index
    %c0_2 = arith.constant 0 : index
    %c0_3 = arith.constant 0 : index
    %1 = vector.load %arg3[%c0_1, %c0_2, %c0_3] : memref<1x32x256xf32, #tpu.memory_space<vmem>>, vector<1x32x256xf32>
    %2 = vector.shape_cast %1 : vector<1x32x256xf32> to vector<32x256xf32>
    %cst = arith.constant dense<0.000000e+00> : vector<8x256xf32>
    %3 = tpu.matmul %0, %2, %cst {dimension_numbers = #tpu.dot_dimension_numbers<[1], [0], [0], [1], [0, 0, 1, 1], [], []>} : vector<8x32xf32>, vector<32x256xf32>, vector<8x256xf32> -> vector<8x256xf32>
    %c0_4 = arith.constant 0 : index
    %c0_5 = arith.constant 0 : index
    %c0_6 = arith.constant 0 : index
    %4 = vector.load %arg4[%c0_4, %c0_5, %c0_6] : memref<1x8x256xf32, #tpu.memory_space<vmem>>, vector<1x8x256xf32>
    %5 = vector.shape_cast %4 : vector<1x8x256xf32> to vector<8x256xf32>
    %6 = vector.shape_cast %3 : vector<8x256xf32> to vector<1x8x256xf32>
    tpu.vector_store %arg4[%c0_4, %c0_5, %c0_6], %6 {strides = array<i32>} : memref<1x8x256xf32, #tpu.memory_space<vmem>>, vector<1x8x256xf32>,
    return
  }
  func.func @transform_0(%arg0: i32, %arg1: i32) -> (i32, i32) {
    %c0_i32 = arith.constant 0 : i32
    %c0_i32_0 = arith.constant 0 : i32
    %c0_i32_1 = arith.constant 0 : i32
    return %c0_i32, %c0_i32_0 : i32, i32
  }
  func.func @transform_1(%arg0: i32, %arg1: i32) -> (i32, i32, i32) {
    %c0_i32 = arith.constant 0 : i32
    %c0_i32_0 = arith.constant 0 : i32
    return %arg0, %c0_i32, %arg1 : i32, i32, i32
  }
  func.func @transform_2(%arg0: i32, %arg1: i32) -> (i32, i32, i32) {
    %c0_i32 = arith.constant 0 : i32
    %c0_i32_0 = arith.constant 0 : i32
    return %arg0, %c0_i32, %arg1 : i32, i32, i32
  }
}

</mosaic_0001>

<llo_original>
// kernel: conv_test_forward.1
$region0: #{conv_test_forward.1}
  #allocation0 [shape = 'u32[]', space=smem, size = 0x4, offset = 0x4, fixed_abs, tag = 'smem constant byte address 0x4 - core index']
  #allocation1 [shape = 'u32[144,128]{1,0:T(1,128)}', space=vmem, size = 0x12000, scoped, tag = 'internal scratch']
  %s0 = inlined_call_operand.vmem [shape: f32[8,32], index: 0, kind: input, shape index: {}]
  %s1 = inlined_call_operand.vmem [shape: f32[2,32,256], index: 1, kind: input, shape index: {}]
  %s2 = inlined_call_operand.vmem [shape: f32[2,8,256], index: 2, kind: output, shape index: {}]
  %s3 = sld [smem:[#allocation0]]
  $region41: #{conv_test_forward.1} parent=0
    _
  %s5 = ssub.s32 1, %s3
  %s6 = scalar_select 0, %s5, %s3
  loop: start=0, step=1, limit=4
  $region2: #{conv_test_forward.1} parent=0 // loop_pre_header
    _
  $region3: #{conv_test_forward.1} parent=0 // loop_header
    %s8 = sphi 0, %s12
    %p9 = scmp.ge.s32.totalorder %s8, 4
    %s15 = sphi 0, %s27
    %s16 = sphi 0, %s23
    %s17 = sphi 0, %s15
    %s18 = sphi 0, %s16
    %s19 = sphi 0, %s17
    %s20 = sphi 0, %s18
    %s28 = sphi 0, %s28
    %s30 = sphi 0, %s28
    %s31 = sphi 0, %s30
    %s45 = sphi 0, %s31
    %s53 = sphi 0, %s55
    %s56 = sphi 0, %s53
    %s57 = sphi 0, %s56
    %s73 = sphi 0, %s57
    %s81 = sphi 0, %s83
    %s84 = sphi 0, %s81
    %s85 = sphi 0, %s84
    %s101 = sphi 0, %s85
  $region4: #{conv_test_forward.1} parent=0 // loop_header_branch
    %11 = sbr.rel (%p9) target = $region8
  $region5: #{conv_test_forward.1} parent=0 // loop_body
    %s13 = ssub.s32 %s8, 1
    %s14 = ssub.s32 %s8, 2
    %s21 = sadd.s32 1, %s16
    %p22 = scmp.ge.s32.totalorder %s21, 1
    %s23 = scalar_select %p22, 0, %s21
    %s24 = sadd.s32 1, %s15
    %s25 = scalar_select %p22, %s24, %s15
    %p26 = scmp.ge.s32.totalorder %s25, 2
    %s27 = scalar_select %p26, 0, %s25
    %s29 = sadd.s32 %s28, 1
    %p32 = scmp.eq.s32.totalorder %s8, 1
    %p33 = scmp.ne.s32.totalorder %s28, %s30
    %p34 = scmp.eq.s32.totalorder %s8, 0
    %p35 = por %p33, %p34
    %p36 = scmp.ne.s32.totalorder %s28, %s30
    %p37 = scmp.eq.s32.totalorder %s13, 1
    %p38 = por %p36, %p37
    %p39 = scmp.ne.s32.totalorder %s30, %s31
    %p40 = scmp.eq.s32.totalorder %s13, 0
    %p41 = por %p39, %p40
    %p42 = scmp.ne.s32.totalorder %s30, %s31
    %p43 = scmp.eq.s32.totalorder %s14, 1
    %p44 = por %p42, %p43
    %p46 = scmp.ne.s32.totalorder %s31, %s45
    %p47 = scmp.eq.s32.totalorder %s14, 0
    %p48 = por %p46, %p47
    %s49 = ssub.s32 %s15, %s27
    %s50 = ssub.s32 %s16, %s23
    %s51 = sor.u32 %s49, %s50
    %p52 = scmp.eq.s32.totalorder %s51, 0
    %s54 = sadd.s32 %s53, 1
    %s55 = scalar_select %p52, %s53, %s54
    %p58 = pneg %p52
    %p59 = scmp.eq.s32.totalorder %s8, 1
    %p60 = por %p58, %p59
    %p61 = scmp.ne.s32.totalorder %s53, %s56
    %p62 = scmp.eq.s32.totalorder %s8, 0
    %p63 = por %p61, %p62
    %p64 = scmp.ne.s32.totalorder %s53, %s56
    %p65 = scmp.eq.s32.totalorder %s13, 1
    %p66 = por %p64, %p65
    %p67 = scmp.ne.s32.totalorder %s56, %s57
    %p68 = scmp.eq.s32.totalorder %s13, 0
    %p69 = por %p67, %p68
    %p70 = scmp.ne.s32.totalorder %s56, %s57
    %p71 = scmp.eq.s32.totalorder %s14, 1
    %p72 = por %p70, %p71
    %p74 = scmp.ne.s32.totalorder %s57, %s73
    %p75 = scmp.eq.s32.totalorder %s14, 0
    %p76 = por %p74, %p75
    %s77 = ssub.s32 %s15, %s27
    %s78 = ssub.s32 %s16, %s23
    %s79 = sor.u32 %s77, %s78
    %p80 = scmp.eq.s32.totalorder %s79, 0
    %s82 = sadd.s32 %s81, 1
    %s83 = scalar_select %p80, %s81, %s82
    %p86 = pneg %p80
    %p87 = scmp.eq.s32.totalorder %s8, 1
    %p88 = por %p86, %p87
    %p89 = scmp.ne.s32.totalorder %s81, %s84
    %p90 = scmp.eq.s32.totalorder %s8, 0
    %p91 = por %p89, %p90
    %p92 = scmp.ne.s32.totalorder %s81, %s84
    %p93 = scmp.eq.s32.totalorder %s13, 1
    %p94 = por %p92, %p93
    %p95 = scmp.ne.s32.totalorder %s84, %s85
    %p96 = scmp.eq.s32.totalorder %s13, 0
    %p97 = por %p95, %p96
    %p98 = scmp.ne.s32.totalorder %s84, %s85
    %p99 = scmp.eq.s32.totalorder %s14, 1
    %p100 = por %p98, %p99
    %p102 = scmp.ne.s32.totalorder %s85, %s101
    %p103 = scmp.eq.s32.totalorder %s14, 0
    %p104 = por %p102, %p103
    %p105 = scmp.le.s32.totalorder 1, %s8
    %p106 = scmp.lt.s32.totalorder %s8, 3
    %p107 = pnand %p105, %p106
    %p108 = pneg %p107
    // Predicated region
    $region9: #{conv_test_forward.1} parent=5 // pred_check
      _
    $region10: #{conv_test_forward.1} parent=5 // pred_check_branch
      %110 = sbr.rel (%p107) target = $region12
    $region11: #{conv_test_forward.1} parent=5 // pred_region
      %s111 = ssub.s32 %s8, 1
      // Predicated region
      $region13: #{conv_test_forward.1} parent=11 // pred_check
        %p112 = pneg %p41
      $region14: #{conv_test_forward.1} parent=11 // pred_check_branch
        %114 = sbr.rel (%p112) target = $region16
      $region15: #{conv_test_forward.1} parent=11 // pred_region
        _
      $region16: #{conv_test_forward.1} parent=11 // pred_fallthru
        _
    $region12: #{conv_test_forward.1} parent=5 // pred_fallthru
      _
    %p115 = scmp.lt.s32.totalorder %s8, 2
    // Predicated region
    $region17: #{conv_test_forward.1} parent=5 // pred_check
      %p116 = pneg %p115
    $region18: #{conv_test_forward.1} parent=5 // pred_check_branch
      %118 = sbr.rel (%p116) target = $region20
    $region19: #{conv_test_forward.1} parent=5 // pred_region
      // Predicated region
      $region21: #{conv_test_forward.1} parent=19 // pred_check
        %p119 = pneg %p63
      $region22: #{conv_test_forward.1} parent=19 // pred_check_branch
        %121 = sbr.rel (%p119) target = $region24
      $region23: #{conv_test_forward.1} parent=19 // pred_region
        %s122 = smul.u32 2, %s16
        %p123 = scmp.lt.s32.totalorder %s15, 1
        %s124 = scalar_select %p123, %s15, 1
        %p125 = scmp.lt.s32.totalorder %s122, 1
        %s126 = scalar_select %p125, %s122, 1
        %s127 = smul.addr %s124, 8
        %s128 = sadd.s32 %s126, %s127
        %s129 = smul.addr %s128, 8
        %s130 = scalar_lea.vmem %s1, %s129
        %s131 = smul.u32 2, %s16
      $region24: #{conv_test_forward.1} parent=19 // pred_fallthru
        _
    $region20: #{conv_test_forward.1} parent=5 // pred_fallthru
      _
    %p132 = scmp.le.s32.totalorder 1, %s8
    %p133 = scmp.lt.s32.totalorder %s8, 3
    %p134 = pnand %p132, %p133
    %p135 = pneg %p134
    // Predicated region
    $region25: #{conv_test_forward.1} parent=5 // pred_check
      _
    $region26: #{conv_test_forward.1} parent=5 // pred_check_branch
      %137 = sbr.rel (%p134) target = $region28
    $region27: #{conv_test_forward.1} parent=5 // pred_region
      %s138 = ssub.s32 %s8, 1
      %p139 = pneg %p41
      %p140 = pneg %p38
      %s141 = smul.u32 2, %s18
      %p142 = scmp.lt.s32.totalorder %s17, 1
      %s143 = scalar_select %p142, %s17, 1
      %p144 = scmp.lt.s32.totalorder %s141, 1
      %s145 = scalar_select %p144, %s141, 1
      %s146 = smul.addr %s143, 8
      %s147 = sadd.s32 %s145, %s146
      %s148 = smul.addr %s147, 8
      %s149 = scalar_lea.vmem %s1, %s148
      %p150 = pneg %p69
      %p151 = pneg %p66
      %p152 = pneg %p97
      %p153 = pneg %p94
      %s154 = smul.u32 2, %s18
      %p155 = scmp.lt.s32.totalorder %s17, 1
      %s156 = scalar_select %p155, %s17, 1
      %p157 = scmp.lt.s32.totalorder %s154, 1
      %s158 = scalar_select %p157, %s154, 1
      %s159 = smul.addr %s156, 2
      %s160 = sadd.s32 %s158, %s159
      %s161 = smul.addr %s160, 8
      %s162 = scalar_lea.vmem %s2, %s161
      %s163 = smul.u32 2, %s18
      %p164 = scmp.lt.s32.totalorder %s17, 1
      %s165 = scalar_select %p164, %s17, 1
      %p166 = scmp.lt.s32.totalorder %s163, 1
      %s167 = scalar_select %p166, %s163, 1
      %s168 = smul.addr %s165, 8
      %s169 = sadd.s32 %s167, %s168
      %s170 = smul.addr %s169, 8
      %s171 = scalar_lea.vmem %s1, %s170
      %s172 = smul.u32 2, %s18
      %s173 = smul.u32 2, %s18
      %p174 = scmp.lt.s32.totalorder %s17, 1
      %s175 = scalar_select %p174, %s17, 1
      %p176 = scmp.lt.s32.totalorder %s173, 1
      %s177 = scalar_select %p176, %s173, 1
      %s178 = smul.addr %s175, 2
      %s179 = sadd.s32 %s177, %s178
      %s180 = smul.addr %s179, 8
      %s181 = scalar_lea.vmem %s2, %s180
      %s182 = smul.u32 2, %s18
      %v183 = vld [vmem:[%s0] sm:$0xff]
      %v184 = vld [vmem:[%s171] sm:$0xff]
      %v185 = vld [vmem:[%s171 + $0x8] sm:$0xff]
      %v186 = vld [vmem:[%s171 + $0x10] sm:$0xff]
      %v187 = vld [vmem:[%s171 + $0x18] sm:$0xff]
      %v188 = vld [vmem:[%s171 + $0x20] sm:$0xff]
      %v189 = vld [vmem:[%s171 + $0x28] sm:$0xff]
      %v190 = vld [vmem:[%s171 + $0x30] sm:$0xff]
      %v191 = vld [vmem:[%s171 + $0x38] sm:$0xff]
      %vm192 = vcmask 261120
      %v194 = vsel %vm192, %v183, 0
      %196 = vmatprep.subr.mxu0 0.0
      %197 = vmatpush1.msra.mxu0 0.0
      %198 = vmatprep.subr.mxu0 0.0
      %199 = vmatpush1.msra.mxu0 0.0
      %200 = vmatprep.subr.mxu0 0.0
      %201 = vmatpush1.msra.mxu0 0.0
      %202 = vmatprep.subr.mxu0 0.0
      %203 = vmatpush1.msra.mxu0 0.0
      %204 = vmatprep.subr.mxu0 0.0
      %205 = vmatpush1.msra.mxu0 0.0
      %206 = vmatprep.subr.mxu0 0.0
      %207 = vmatpush1.msra.mxu0 0.0
      %208 = vmatprep.subr.mxu0 0.0
      %209 = vmatpush1.msra.mxu0 0.0
      %210 = vmatprep.subr.mxu0 0.0
      %211 = vmatpush1.msra.mxu0 0.0
      %212 = vmatprep.subr.mxu0 0.0
      %213 = vmatpush1.msra.mxu0 0.0
      %214 = vmatprep.subr.mxu0 0.0
      %215 = vmatpush1.msra.mxu0 0.0
      %216 = vmatprep.subr.mxu0 0.0
      %217 = vmatpush1.msra.mxu0 0.0
      %218 = vmatprep.subr.mxu0 0.0
      %219 = vmatpush1.msra.mxu0 0.0
      %220 = vmatprep.subr.mxu0 %v191
      %221 = vmatpush1.msra.mxu0 %v190
      %222 = vmatprep.subr.mxu0 %v189
      %223 = vmatpush1.msra.mxu0 %v188
      %224 = vmatprep.subr.mxu0 %v187
      %225 = vmatpush1.msra.mxu0 %v186
      %226 = vmatprep.subr.mxu0 %v185
      %227 = vmatpush1.msra.mxu0 %v184
      %228 = vmatprep.subr.mxu0 0.0
      %229 = vmatpush2.msra.mxu0 0.0
      %230 = vmatprep.subr.mxu0 0.0
      %231 = vmatpush2.msra.mxu0 0.0
      %232 = vmatprep.subr.mxu0 0.0
      %233 = vmatpush2.msra.mxu0 0.0
      %234 = vmatprep.subr.mxu0 0.0
      %235 = vmatpush2.msra.mxu0 0.0
      %236 = vmatprep.subr.mxu0 0.0
      %237 = vmatpush2.msra.mxu0 0.0
      %238 = vmatprep.subr.mxu0 0.0
      %239 = vmatpush2.msra.mxu0 0.0
      %240 = vmatprep.subr.mxu0 0.0
      %241 = vmatpush2.msra.mxu0 0.0
      %242 = vmatprep.subr.mxu0 0.0
      %243 = vmatpush2.msra.mxu0 0.0
      %244 = vmatprep.subr.mxu0 0.0
      %245 = vmatpush2.msra.mxu0 0.0
      %246 = vmatprep.subr.mxu0 0.0
      %247 = vmatpush2.msra.mxu0 0.0
      %248 = vmatprep.subr.mxu0 0.0
      %249 = vmatpush2.msra.mxu0 0.0
      %250 = vmatprep.subr.mxu0 0.0
      %251 = vmatpush2.msra.mxu0 0.0
      %252 = vmatprep.subr.mxu0 0.0
      %253 = vmatpush2.msra.mxu0 0.0
      %254 = vmatprep.subr.mxu0 0.0
      %255 = vmatpush2.msra.mxu0 0.0
      %256 = vmatprep.subr.mxu0 0.0
      %257 = vmatpush2.msra.mxu0 0.0
      %258 = vmatprep.subr.mxu0 0.0
      %259 = vmatpush2.msra.mxu0 0.0
      %260 = vmatprep.mubr.f32.mxu0 0.0
      %261 = vmatmul.mubr.f32.gmra.mxu0 %v194
      %v262 = vpop.f32.mrf.mxu0
      %v263 = vadd.f32 0.0, %v262
      %v264 = vpop.f32.mrf.mxu0
      %v265 = vadd.f32 0.0, %v264
      %266 = vdwg.mxu0
      %267 = vst [vmem:[%s181] sm:$0xff] %v263
      %268 = vst [vmem:[%s181 + $0x8] sm:$0xff] %v265
      %s269 = smul.u32 2, %s18
      %p270 = scmp.lt.s32.totalorder %s17, 1
      %s271 = scalar_select %p270, %s17, 1
      %p272 = scmp.lt.s32.totalorder %s269, 1
      %s273 = scalar_select %p272, %s269, 1
      %s274 = smul.addr %s271, 2
      %s275 = sadd.s32 %s273, %s274
      %s276 = smul.addr %s275, 8
      %s277 = scalar_lea.vmem %s2, %s276
      // Predicated region
      $region29: #{conv_test_forward.1} parent=27 // pred_check
        %p278 = pneg %p94
      $region30: #{conv_test_forward.1} parent=27 // pred_check_branch
        %280 = sbr.rel (%p278) target = $region32
      $region31: #{conv_test_forward.1} parent=27 // pred_region
        %s281 = smul.u32 2, %s18
      $region32: #{conv_test_forward.1} parent=27 // pred_fallthru
        _
    $region28: #{conv_test_forward.1} parent=5 // pred_fallthru
      _
    %p282 = scmp.le.s32.totalorder 2, %s8
    // Predicated region
    $region33: #{conv_test_forward.1} parent=5 // pred_check
      %p283 = pneg %p282
    $region34: #{conv_test_forward.1} parent=5 // pred_check_branch
      %285 = sbr.rel (%p283) target = $region36
    $region35: #{conv_test_forward.1} parent=5 // pred_region
      %s286 = ssub.s32 %s8, 2
      // Predicated region
      $region37: #{conv_test_forward.1} parent=35 // pred_check
        %p287 = pneg %p100
      $region38: #{conv_test_forward.1} parent=35 // pred_check_branch
        %289 = sbr.rel (%p287) target = $region40
      $region39: #{conv_test_forward.1} parent=35 // pred_region
        %s290 = smul.u32 2, %s20
        %p291 = scmp.lt.s32.totalorder %s19, 1
        %s292 = scalar_select %p291, %s19, 1
        %p293 = scmp.lt.s32.totalorder %s290, 1
        %s294 = scalar_select %p293, %s290, 1
        %s295 = smul.addr %s292, 2
        %s296 = sadd.s32 %s294, %s295
        %s297 = smul.addr %s296, 8
        %s298 = scalar_lea.vmem %s2, %s297
      $region40: #{conv_test_forward.1} parent=35 // pred_fallthru
        _
    $region36: #{conv_test_forward.1} parent=5 // pred_fallthru
      _
  $region6: #{conv_test_forward.1} parent=0 // loop_footer
    %s12 = sadd.s32 1, %s8
  $region7: #{conv_test_forward.1} parent=0 // loop_footer_branch
    %7 = sbr.rel target = $region3
  $region8: #{conv_test_forward.1} parent=0 // loop_exit
    _

</llo_original>
